<compile_context>
chip_gen: v7x
topology: tpu7x:2x2x1
jax: 0.10.0
libtpu: 0.0.40
codegen_flags: <defaults>
</compile_context>

<pallas_src>
import jax
import jax.numpy as jnp
from jax.experimental import pallas as pl
from jax.experimental.pallas import tpu as pltpu

NUM_CLASSES = 200      # len(train_dataset.classes) for CUB-200-2011
BN_EPS = 1e-5
VMEM_LIMIT = 48 * 1024 * 1024   # ~75% of v7x's 64 MiB; plenty of headroom on v5e/v6e


# ----------------------------- Pallas kernels -----------------------------

def conv_bn_relu_pool_kernel(x_ref, w_ref, shift_ref, o_ref):
    """Fused Conv3x3(pad=1) + BatchNorm(eval, scale folded into w) + ReLU + MaxPool2x2.

    x_ref:     (1, 4, tP, 9*Cin) bf16 im2col patches; axis 1 = 2x2 pool-window member,
               tP = tile of pooled positions (16-aligned).
    w_ref:     (9*Cin, Cout)     bf16 conv weight, BN scale pre-folded.
    shift_ref: (1, Cout)         f32 folded BN shift = beta + (conv_bias - mean)*scale.
    o_ref:     (1, tP, Cout)     bf16 pooled output.
    """
    x = x_ref[0]                               # (4, tP, F)
    tP = x.shape[1]
    xf = x.reshape(4 * tP, x.shape[2])         # sublane-aligned merge
    z = jnp.dot(xf, w_ref[...], preferred_element_type=jnp.float32)   # one MXU push
    # Pool max FIRST (raw conv output), then per-channel shift + ReLU on tP rows only.
    # Exact: shift is identical across the 4 pool members and ReLU is monotone.
    zmax = jnp.maximum(jnp.maximum(z[0:tP], z[tP:2 * tP]),
                       jnp.maximum(z[2 * tP:3 * tP], z[3 * tP:4 * tP]))
    pooled = jnp.maximum(zmax + shift_ref[...], 0.0)
    # TODO(synk): Cout=64 layer stores at half lane occupancy; emitting the next layer's
    # consumption layout directly would make this lane-dense (low priority, small bytes).
    o_ref[0] = pooled.astype(o_ref.dtype)


def conv_bn_relu_pool_sop_kernel(x_ref, w_ref, shift_ref, o_ref, gram_ref):
    """Conv3x3 + BN + ReLU + MaxPool2x2, fused with second-order (bilinear) pooling.

    Accumulates G += pooled^T @ pooled over the P-tile grid axis (axis 1, "arbitrary")
    into a resident f32 VMEM scratch; emits G / HW as bf16 on the last tile.
    The pooled activations never touch HBM.
    """
    t = pl.program_id(1)

    x = x_ref[0]                               # (4, tP, F)
    tP = x.shape[1]
    xf = x.reshape(4 * tP, x.shape[2])
    z = jnp.dot(xf, w_ref[...], preferred_element_type=jnp.float32)
    zmax = jnp.maximum(jnp.maximum(z[0:tP], z[tP:2 * tP]),
                       jnp.maximum(z[2 * tP:3 * tP], z[3 * tP:4 * tP]))
    pooled = jnp.maximum(zmax + shift_ref[...], 0.0).astype(jnp.bfloat16)   # (tP, Cout)

    @pl.when(t == 0)
    def _():
        gram_ref[...] = jnp.zeros_like(gram_ref)

    gram_ref[...] += jax.lax.dot_general(
        pooled, pooled, (((0,), (0,)), ((), ())),
        preferred_element_type=jnp.float32)                                 # (Cout, Cout)

    @pl.when(t == pl.num_programs(1) - 1)
    def _():
        hw = tP * pl.num_programs(1)
        o_ref[0] = (gram_ref[...] * (1.0 / hw)).astype(o_ref.dtype)


def linear_accum_kernel(x_ref, w_ref, b_ref, o_ref):
    """K-tiled FC: out = x @ w + b, accumulating directly into the resident o_ref."""
    k = pl.program_id(1)

    @pl.when(k == 0)
    def _():
        o_ref[...] = jnp.zeros_like(o_ref) + b_ref[...]   # init with bias

    o_ref[...] += jnp.dot(x_ref[...], w_ref[...],
                          preferred_element_type=jnp.float32)


def linear_simple_kernel(x_ref, w_ref, b_ref, o_ref):
    """Single-shot FC (small weight): out = x @ w + b."""
    o_ref[...] = (jnp.dot(x_ref[...], w_ref[...],
                          preferred_element_type=jnp.float32)
                  + b_ref[...]).astype(o_ref.dtype)


# ------------------------------ wrappers ----------------------------------

def _pick_pool_tile(P, max_tile=1024):
    """Largest divisor of P <= max_tile, preferring 16-aligned (bf16 sublane packing)."""
    if P <= max_tile:
        return P
    for align in (16, 8):
        for d in range(max_tile, align - 1, -1):
            if P % d == 0 and d % align == 0:
                return d
    return P


def _im2col_pool_patches(x_nhwc):
    """(B,H,W,Cin) -> (B,4,P,9*Cin) bf16 im2col patches, rows grouped by 2x2 pool member.

    TODO(synk): this is the dominant HBM traffic of the forward (9x expansion for the
    Cin=64 layer); should move inside the kernel via a halo DMA.
    """
    B, H, W, Cin = x_nhwc.shape
    H2, W2 = H // 2, W // 2
    P, F = H2 * W2, 9 * Cin
    x = x_nhwc.astype(jnp.bfloat16)
    xp = jnp.pad(x, ((0, 0), (1, 1), (1, 1), (0, 0)))
    taps = [xp[:, dy:dy + H, dx:dx + W, :] for dy in range(3) for dx in range(3)]
    patches = jnp.concatenate(taps, axis=-1)                     # (B, H, W, F)
    patches = patches.reshape(B, H2, 2, W2, 2, F)
    patches = patches.transpose(0, 2, 4, 1, 3, 5)                # (B, 2, 2, H2, W2, F)
    return patches.reshape(B, 4, P, F), P, F


def _fold_bn(w, conv_bias, gamma, beta, mean, var):
    """Fold BN (eval) scale into the conv weight; return (w2d bf16 (F,Cout), shift f32 (1,Cout))."""
    Cout = w.shape[-1]
    F = w.shape[0] * w.shape[1] * w.shape[2]
    scale = gamma / jnp.sqrt(var + BN_EPS)
    shift = (beta + (conv_bias - mean) * scale).astype(jnp.float32).reshape(1, Cout)
    w2d = (w.reshape(F, Cout) * scale).astype(jnp.bfloat16)
    return w2d, shift


def conv_bn_relu_pool(x_nhwc, w, conv_bias, gamma, beta, mean, var):
    """Conv2d(3x3, pad=1) + BatchNorm2d(eval) + ReLU + MaxPool2d(2). Returns (B, P, Cout) bf16."""
    B = x_nhwc.shape[0]
    Cout = w.shape[-1]
    patches, P, F = _im2col_pool_patches(x_nhwc)
    w2d, shift = _fold_bn(w, conv_bias, gamma, beta, mean, var)

    tP = _pick_pool_tile(P)
    grid = (B, P // tP)

    return pl.pallas_call(
        conv_bn_relu_pool_kernel,
        out_shape=jax.ShapeDtypeStruct((B, P, Cout), jnp.bfloat16),
        grid_spec=pltpu.PrefetchScalarGridSpec(
            num_scalar_prefetch=0,
            grid=grid,
            in_specs=[
                pl.BlockSpec((1, 4, tP, F), lambda b, t: (b, 0, t, 0)),
                pl.BlockSpec((F, Cout), lambda b, t: (0, 0)),
                pl.BlockSpec((1, Cout), lambda b, t: (0, 0)),
            ],
            out_specs=pl.BlockSpec((1, tP, Cout), lambda b, t: (b, t, 0)),
        ),
        compiler_params=pltpu.CompilerParams(
            dimension_semantics=("parallel", "parallel"),
            vmem_limit_bytes=VMEM_LIMIT),
    )(patches, w2d, shift)


def conv_bn_relu_pool_sop(x_nhwc, w, conv_bias, gamma, beta, mean, var):
    """Conv+BN+ReLU+MaxPool fused with second-order pooling. Returns (B, Cout, Cout) bf16."""
    B = x_nhwc.shape[0]
    Cout = w.shape[-1]
    patches, P, F = _im2col_pool_patches(x_nhwc)
    w2d, shift = _fold_bn(w, conv_bias, gamma, beta, mean, var)

    tP = _pick_pool_tile(P)
    grid = (B, P // tP)   # P axis is a reduction for the Gram accumulator -> "arbitrary"

    return pl.pallas_call(
        conv_bn_relu_pool_sop_kernel,
        out_shape=jax.ShapeDtypeStruct((B, Cout, Cout), jnp.bfloat16),
        grid_spec=pltpu.PrefetchScalarGridSpec(
            num_scalar_prefetch=0,
            grid=grid,
            in_specs=[
                pl.BlockSpec((1, 4, tP, F), lambda b, t: (b, 0, t, 0)),
                pl.BlockSpec((F, Cout), lambda b, t: (0, 0)),
                pl.BlockSpec((1, Cout), lambda b, t: (0, 0)),
            ],
            out_specs=pl.BlockSpec((1, Cout, Cout), lambda b, t: (b, 0, 0)),
            scratch_shapes=[pltpu.VMEM((Cout, Cout), jnp.float32)],
        ),
        compiler_params=pltpu.CompilerParams(
            dimension_semantics=("parallel", "arbitrary"),
            vmem_limit_bytes=VMEM_LIMIT),
    )(patches, w2d, shift)


def linear_ktiled(x, w, b, *, tn, tk):
    B, K = x.shape
    N = w.shape[1]
    assert K % tk == 0 and N % tn == 0
    return pl.pallas_call(
        linear_accum_kernel,
        out_shape=jax.ShapeDtypeStruct((B, N), jnp.float32),
        grid_spec=pltpu.PrefetchScalarGridSpec(
            num_scalar_prefetch=0,
            grid=(N // tn, K // tk),
            in_specs=[
                pl.BlockSpec((B, tk), lambda n, k: (0, k)),
                pl.BlockSpec((tk, tn), lambda n, k: (k, n)),
                pl.BlockSpec((1, tn), lambda n, k: (0, n)),
            ],
            out_specs=pl.BlockSpec((B, tn), lambda n, k: (0, n)),
        ),
        compiler_params=pltpu.CompilerParams(
            dimension_semantics=("parallel", "arbitrary"),
            vmem_limit_bytes=VMEM_LIMIT),
    )(x, w, b.reshape(1, N))


def linear_simple(x, w, b):
    B, K = x.shape
    N = w.shape[1]
    return pl.pallas_call(
        linear_simple_kernel,
        out_shape=jax.ShapeDtypeStruct((B, N), jnp.float32),
        grid_spec=pltpu.PrefetchScalarGridSpec(
            num_scalar_prefetch=0,
            grid=(1,),
            in_specs=[
                pl.BlockSpec((B, K), lambda i: (0, 0)),
                pl.BlockSpec((K, N), lambda i: (0, 0)),
                pl.BlockSpec((1, N), lambda i: (0, 0)),
            ],
            out_specs=pl.BlockSpec((B, N), lambda i: (0, 0)),
        ),
        compiler_params=pltpu.CompilerParams(dimension_semantics=("arbitrary",)),
    )(x, w, b.reshape(1, N))


def cub200cnn_forward(x_nchw, p):
    x = jnp.transpose(x_nchw, (0, 2, 3, 1)).astype(jnp.bfloat16)   # NCHW -> NHWC, bf16
    B, H, W, _ = x.shape
    # layer1: conv+bn+relu+pool -> (B, P1, 64) bf16
    y1 = conv_bn_relu_pool(x, p['w1'], p['b1'], p['g1'], p['be1'], p['m1'], p['v1'])
    y1 = y1.reshape(B, H // 2, W // 2, p['w1'].shape[-1])
    # layer2 + second-order pooling fused -> (B, 128, 128) bf16 Gram / HW
    g = conv_bn_relu_pool_sop(y1, p['w2'], p['b2'], p['g2'], p['be2'], p['m2'], p['v2'])
    flat = g.reshape(B, -1)                                        # (B, 16384) bf16
    # fc1: tn=512 so the parallel N axis has extent 2 (v7x megacore streams half each)
    h = linear_ktiled(flat, p['wf1'].astype(jnp.bfloat16), p['bf1'], tn=512, tk=4096)
    # TODO(synk): nn.Dropout(0.5) is treated as inference-mode identity (no RNG mask).
    # fc2 in bf16 (f32 accumulate)
    return linear_simple(h.astype(jnp.bfloat16), p['wf2'].astype(jnp.bfloat16), p['bf2'])


# ------------------------- params & pure-JAX reference ---------------------

def init_params(key):
    ks = jax.random.split(key, 16)
    f32 = jnp.float32
    p = {}
    p['w1'] = 0.10 * jax.random.normal(ks[0], (3, 3, 3, 64), f32)
    p['b1'] = 0.10 * jax.random.normal(ks[1], (64,), f32)
    p['g1'] = 1.0 + 0.1 * jax.random.normal(ks[2], (64,), f32)
    p['be1'] = 0.10 * jax.random.normal(ks[3], (64,), f32)
    p['m1'] = 0.10 * jax.random.normal(ks[4], (64,), f32)
    p['v1'] = jax.random.uniform(ks[5], (64,), f32, 0.5, 1.5)
    p['w2'] = 0.05 * jax.random.normal(ks[6], (3, 3, 64, 128), f32)
    p['b2'] = 0.10 * jax.random.normal(ks[7], (128,), f32)
    p['g2'] = 1.0 + 0.1 * jax.random.normal(ks[8], (128,), f32)
    p['be2'] = 0.10 * jax.random.normal(ks[9], (128,), f32)
    p['m2'] = 0.10 * jax.random.normal(ks[10], (128,), f32)
    p['v2'] = jax.random.uniform(ks[11], (128,), f32, 0.5, 1.5)
    p['wf1'] = 0.01 * jax.random.normal(ks[12], (128 * 128, 1024), f32)
    p['bf1'] = 0.01 * jax.random.normal(ks[13], (1024,), f32)
    p['wf2'] = 0.02 * jax.random.normal(ks[14], (1024, NUM_CLASSES), f32)
    p['bf2'] = 0.01 * jax.random.normal(ks[15], (NUM_CLASSES,), f32)
    return p


def reference_forward(x_nchw, p):
    x = jnp.transpose(x_nchw, (0, 2, 3, 1)).astype(jnp.float32)

    def block(x, w, b, g, be, m, v):
        y = jax.lax.conv_general_dilated(
            x, w, window_strides=(1, 1), padding='SAME',
            dimension_numbers=('NHWC', 'HWIO', 'NHWC'),
            precision=jax.lax.Precision.HIGHEST) + b
        y = (y - m) / jnp.sqrt(v + BN_EPS) * g + be
        y = jnp.maximum(y, 0.0)
        return jax.lax.reduce_window(y, -jnp.inf, jax.lax.max,
                                     (1, 2, 2, 1), (1, 2, 2, 1), 'VALID')

    x = block(x, p['w1'], p['b1'], p['g1'], p['be1'], p['m1'], p['v1'])
    x = block(x, p['w2'], p['b2'], p['g2'], p['be2'], p['m2'], p['v2'])
    B, H, W, C = x.shape
    xf = jnp.transpose(x, (0, 3, 1, 2)).reshape(B, C, H * W)
    g = jnp.einsum('bcn,bdn->bcd', xf, xf,
                   precision=jax.lax.Precision.HIGHEST) / (H * W)
    flat = g.reshape(B, -1)
    h = jnp.dot(flat, p['wf1'], precision=jax.lax.Precision.HIGHEST) + p['bf1']
    return jnp.dot(h, p['wf2'], precision=jax.lax.Precision.HIGHEST) + p['bf2']


if __name__ == "__main__":
    key = jax.random.PRNGKey(0)
    pkey, xkey = jax.random.split(key)
    params = init_params(pkey)
    x = jax.random.normal(xkey, (2, 3, 16, 16), jnp.float32)   # NCHW, like PyTorch

    out = cub200cnn_forward(x, params)
    out = jax.block_until_ready(out)
    assert out.shape == (2, NUM_CLASSES), out.shape

    ref = reference_forward(x, params)
    if not jnp.allclose(out, ref, rtol=5e-2, atol=5e-2):
        raise AssertionError(
            f"mismatch vs reference, max abs err={jnp.max(jnp.abs(out - ref))}")

    print("KERNEL_OK")
</pallas_src>

<mosaic_0001>
module attributes {stable_mosaic.version = 11 : i64} {
  func.func @conv_bn_relu_pool_kernel(%arg0: i32, %arg1: i32, %arg2: memref<1x4x64x27xbf16, #tpu.memory_space<vmem>>, %arg3: memref<27x64xbf16, #tpu.memory_space<vmem>>, %arg4: memref<1x64xf32, #tpu.memory_space<vmem>>, %arg5: memref<1x64x64xbf16, #tpu.memory_space<vmem>>) attributes {dimension_semantics = [#tpu.dimension_semantics<parallel>, #tpu.dimension_semantics<parallel>], iteration_bounds = array<i64: 2, 1>, scalar_prefetch = 0 : i64, scratch_operands = 0 : i64, tpu.core_type = #tpu.core_type<tc>, window_params = [{transform_indices = @transform_0, window_bounds = array<i64: 1, 4, 64, 27>}, {pipeline_mode = #tpu.pipeline_mode<synchronous>, transform_indices = @transform_1, window_bounds = array<i64: 27, 64>}, {pipeline_mode = #tpu.pipeline_mode<synchronous>, transform_indices = @transform_2, window_bounds = array<i64: 1, 64>}, {transform_indices = @transform_3, window_bounds = array<i64: 1, 64, 64>}]} {
    %c0 = arith.constant 0 : index
    %c0_0 = arith.constant 0 : index
    %c0_1 = arith.constant 0 : index
    %c0_2 = arith.constant 0 : index
    %0 = vector.load %arg2[%c0, %c0_0, %c0_1, %c0_2] : memref<1x4x64x27xbf16, #tpu.memory_space<vmem>>, vector<1x4x64x27xbf16>
    %1 = vector.shape_cast %0 : vector<1x4x64x27xbf16> to vector<4x64x27xbf16>
    %2 = vector.shape_cast %1 : vector<4x64x27xbf16> to vector<256x27xbf16>
    %c0_3 = arith.constant 0 : index
    %c0_4 = arith.constant 0 : index
    %3 = vector.load %arg3[%c0_3, %c0_4] : memref<27x64xbf16, #tpu.memory_space<vmem>>, vector<27x64xbf16>
    %cst = arith.constant dense<0.000000e+00> : vector<256x64xf32>
    %4 = tpu.matmul %2, %3, %cst {dimension_numbers = #tpu.dot_dimension_numbers<[1], [0], [0], [1], [0, 0, 1, 1], [], []>} : vector<256x27xbf16>, vector<27x64xbf16>, vector<256x64xf32> -> vector<256x64xf32>
    %5 = vector.extract_strided_slice %4 {offsets = [0, 0], sizes = [64, 64], strides = [1, 1]} : vector<256x64xf32> to vector<64x64xf32>
    %6 = vector.extract_strided_slice %4 {offsets = [64, 0], sizes = [64, 64], strides = [1, 1]} : vector<256x64xf32> to vector<64x64xf32>
    %7 = arith.maximumf %5, %6 : vector<64x64xf32>
    %8 = vector.extract_strided_slice %4 {offsets = [128, 0], sizes = [64, 64], strides = [1, 1]} : vector<256x64xf32> to vector<64x64xf32>
    %9 = vector.extract_strided_slice %4 {offsets = [192, 0], sizes = [64, 64], strides = [1, 1]} : vector<256x64xf32> to vector<64x64xf32>
    %10 = arith.maximumf %8, %9 : vector<64x64xf32>
    %11 = arith.maximumf %7, %10 : vector<64x64xf32>
    %c0_5 = arith.constant 0 : index
    %c0_6 = arith.constant 0 : index
    %12 = vector.load %arg4[%c0_5, %c0_6] : memref<1x64xf32, #tpu.memory_space<vmem>>, vector<1x64xf32>
    %13 = vector.broadcast %12 : vector<1x64xf32> to vector<64x64xf32>
    %14 = arith.addf %11, %13 : vector<64x64xf32>
    %cst_7 = arith.constant 0.000000e+00 : f32
    %15 = vector.broadcast %cst_7 : f32 to vector<64x64xf32>
    %16 = arith.maximumf %14, %15 : vector<64x64xf32>
    %17 = arith.truncf %16 : vector<64x64xf32> to vector<64x64xbf16>
    %c0_8 = arith.constant 0 : index
    %c0_9 = arith.constant 0 : index
    %c0_10 = arith.constant 0 : index
    %18 = vector.load %arg5[%c0_8, %c0_9, %c0_10] : memref<1x64x64xbf16, #tpu.memory_space<vmem>>, vector<1x64x64xbf16>
    %19 = vector.shape_cast %18 : vector<1x64x64xbf16> to vector<64x64xbf16>
    %20 = vector.shape_cast %17 : vector<64x64xbf16> to vector<1x64x64xbf16>
    tpu.vector_store %arg5[%c0_8, %c0_9, %c0_10], %20 {strides = array<i32>} : memref<1x64x64xbf16, #tpu.memory_space<vmem>>, vector<1x64x64xbf16>,
    return
  }
  func.func @transform_0(%arg0: i32, %arg1: i32) -> (i32, i32, i32, i32) {
    %c0_i32 = arith.constant 0 : i32
    %c0_i32_0 = arith.constant 0 : i32
    %c0_i32_1 = arith.constant 0 : i32
    return %arg0, %c0_i32, %arg1, %c0_i32_0 : i32, i32, i32, i32
  }
  func.func @transform_1(%arg0: i32, %arg1: i32) -> (i32, i32) {
    %c0_i32 = arith.constant 0 : i32
    %c0_i32_0 = arith.constant 0 : i32
    %c0_i32_1 = arith.constant 0 : i32
    return %c0_i32, %c0_i32_0 : i32, i32
  }
  func.func @transform_2(%arg0: i32, %arg1: i32) -> (i32, i32) {
    %c0_i32 = arith.constant 0 : i32
    %c0_i32_0 = arith.constant 0 : i32
    %c0_i32_1 = arith.constant 0 : i32
    return %c0_i32, %c0_i32_0 : i32, i32
  }
  func.func @transform_3(%arg0: i32, %arg1: i32) -> (i32, i32, i32) {
    %c0_i32 = arith.constant 0 : i32
    %c0_i32_0 = arith.constant 0 : i32
    return %arg0, %arg1, %c0_i32 : i32, i32, i32
  }
}

</mosaic_0001>

<llo_original>
// kernel: tpu_custom_call.1
$region0: #{tpu_custom_call.1}
  #allocation0 [shape = 'u32[]', space=smem, size = 0x4, offset = 0x4, fixed_abs, tag = 'smem constant byte address 0x4 - core index']
  #allocation1 [shape = 'u32[144,128]{1,0:T(1,128)}', space=vmem, size = 0x12000, scoped, tag = 'internal scratch']
  %s0 = inlined_call_operand.vmem [shape: bf16[2,4,64,27], index: 0, kind: input, shape index: {}]
  %s1 = inlined_call_operand.vmem [shape: bf16[27,64], index: 1, kind: input, shape index: {}]
  %s2 = inlined_call_operand.vmem [shape: f32[1,64], index: 2, kind: input, shape index: {}]
  %s3 = inlined_call_operand.hbm [shape: bf16[2,64,64], index: 3, kind: output, shape index: {}]
  %s4 = sld [smem:[#allocation0]]
  $region45: #{tpu_custom_call.1} parent=0
    _
  %s6 = ssub.s32 1, %s4
  %s7 = scalar_select 0, %s6, %s4
  $region1: #{tpu_custom_call.1} parent=0
    #allocation2 [shape = 'u8[32768]{0}', space=vmem, size = 0x8000, scoped, tag = 'output window, operand 0']
    #allocation3 [shape = 's32[2]{0}', space=sflag, size = 0x8, scoped, tag = 'scoped memory for tpu_custom_call.1']
    %8 = vsyncpa [#allocation3], 0
    %s9 = scalar_lea.sflag [#allocation3], 1
    %10 = vsyncpa %s9, 0
    loop: start=0, step=1, limit=4
    $region2: #{tpu_custom_call.1} parent=1 // loop_pre_header
      _
    $region3: #{tpu_custom_call.1} parent=1 // loop_header
      %s12 = sphi 0, %s16
      %p13 = scmp.ge.s32.totalorder %s12, 4
      %s19 = sphi 0, %s31
      %s20 = sphi 0, %s27
      %s21 = sphi 0, %s19
      %s22 = sphi 0, %s20
      %s23 = sphi 0, %s21
      %s24 = sphi 0, %s22
      %s36 = sphi 0, %s38
      %s39 = sphi 0, %s36
      %s40 = sphi 0, %s39
      %s56 = sphi 0, %s40
      %s60 = sphi 0, %s60
      %s62 = sphi 0, %s60
      %s63 = sphi 0, %s62
      %s77 = sphi 0, %s63
      %s81 = sphi 0, %s81
      %s83 = sphi 0, %s81
      %s84 = sphi 0, %s83
      %s98 = sphi 0, %s84
      %s106 = sphi 0, %s108
      %s109 = sphi 0, %s106
      %s110 = sphi 0, %s109
      %s126 = sphi 0, %s110
    $region4: #{tpu_custom_call.1} parent=1 // loop_header_branch
      %15 = sbr.rel (%p13) target = $region8
    $region5: #{tpu_custom_call.1} parent=1 // loop_body
      %s17 = ssub.s32 %s12, 1
      %s18 = ssub.s32 %s12, 2
      %s25 = sadd.s32 1, %s20
      %p26 = scmp.ge.s32.totalorder %s25, 1
      %s27 = scalar_select %p26, 0, %s25
      %s28 = sadd.s32 1, %s19
      %s29 = scalar_select %p26, %s28, %s19
      %p30 = scmp.ge.s32.totalorder %s29, 2
      %s31 = scalar_select %p30, 0, %s29
      %s32 = ssub.s32 %s19, %s31
      %s33 = ssub.s32 %s20, %s27
      %s34 = sor.u32 %s32, %s33
      %p35 = scmp.eq.s32.totalorder %s34, 0
      %s37 = sadd.s32 %s36, 1
      %s38 = scalar_select %p35, %s36, %s37
      %p41 = pneg %p35
      %p42 = scmp.eq.s32.totalorder %s12, 1
      %p43 = por %p41, %p42
      %p44 = scmp.ne.s32.totalorder %s36, %s39
      %p45 = scmp.eq.s32.totalorder %s12, 0
      %p46 = por %p44, %p45
      %p47 = scmp.ne.s32.totalorder %s36, %s39
      %p48 = scmp.eq.s32.totalorder %s17, 1
      %p49 = por %p47, %p48
      %p50 = scmp.ne.s32.totalorder %s39, %s40
      %p51 = scmp.eq.s32.totalorder %s17, 0
      %p52 = por %p50, %p51
      %p53 = scmp.ne.s32.totalorder %s39, %s40
      %p54 = scmp.eq.s32.totalorder %s18, 1
      %p55 = por %p53, %p54
      %p57 = scmp.ne.s32.totalorder %s40, %s56
      %p58 = scmp.eq.s32.totalorder %s18, 0
      %p59 = por %p57, %p58
      %s61 = sadd.s32 %s60, 1
      %p64 = scmp.eq.s32.totalorder %s12, 1
      %p65 = scmp.ne.s32.totalorder %s60, %s62
      %p66 = scmp.eq.s32.totalorder %s12, 0
      %p67 = por %p65, %p66
      %p68 = scmp.ne.s32.totalorder %s60, %s62
      %p69 = scmp.eq.s32.totalorder %s17, 1
      %p70 = por %p68, %p69
      %p71 = scmp.ne.s32.totalorder %s62, %s63
      %p72 = scmp.eq.s32.totalorder %s17, 0
      %p73 = por %p71, %p72
      %p74 = scmp.ne.s32.totalorder %s62, %s63
      %p75 = scmp.eq.s32.totalorder %s18, 1
      %p76 = por %p74, %p75
      %p78 = scmp.ne.s32.totalorder %s63, %s77
      %p79 = scmp.eq.s32.totalorder %s18, 0
      %p80 = por %p78, %p79
      %s82 = sadd.s32 %s81, 1
      %p85 = scmp.eq.s32.totalorder %s12, 1
      %p86 = scmp.ne.s32.totalorder %s81, %s83
      %p87 = scmp.eq.s32.totalorder %s12, 0
      %p88 = por %p86, %p87
      %p89 = scmp.ne.s32.totalorder %s81, %s83
      %p90 = scmp.eq.s32.totalorder %s17, 1
      %p91 = por %p89, %p90
      %p92 = scmp.ne.s32.totalorder %s83, %s84
      %p93 = scmp.eq.s32.totalorder %s17, 0
      %p94 = por %p92, %p93
      %p95 = scmp.ne.s32.totalorder %s83, %s84
      %p96 = scmp.eq.s32.totalorder %s18, 1
      %p97 = por %p95, %p96
      %p99 = scmp.ne.s32.totalorder %s84, %s98
      %p100 = scmp.eq.s32.totalorder %s18, 0
      %p101 = por %p99, %p100
      %s102 = ssub.s32 %s19, %s31
      %s103 = ssub.s32 %s20, %s27
      %s104 = sor.u32 %s102, %s103
      %p105 = scmp.eq.s32.totalorder %s104, 0
      %s107 = sadd.s32 %s106, 1
      %s108 = scalar_select %p105, %s106, %s107
      %p111 = pneg %p105
      %p112 = scmp.eq.s32.totalorder %s12, 1
      %p113 = por %p111, %p112
      %p114 = scmp.ne.s32.totalorder %s106, %s109
      %p115 = scmp.eq.s32.totalorder %s12, 0
      %p116 = por %p114, %p115
      %p117 = scmp.ne.s32.totalorder %s106, %s109
      %p118 = scmp.eq.s32.totalorder %s17, 1
      %p119 = por %p117, %p118
      %p120 = scmp.ne.s32.totalorder %s109, %s110
      %p121 = scmp.eq.s32.totalorder %s17, 0
      %p122 = por %p120, %p121
      %p123 = scmp.ne.s32.totalorder %s109, %s110
      %p124 = scmp.eq.s32.totalorder %s18, 1
      %p125 = por %p123, %p124
      %p127 = scmp.ne.s32.totalorder %s110, %s126
      %p128 = scmp.eq.s32.totalorder %s18, 0
      %p129 = por %p127, %p128
      %p130 = scmp.le.s32.totalorder 1, %s12
      %p131 = scmp.lt.s32.totalorder %s12, 3
      %p132 = pnand %p130, %p131
      %p133 = pneg %p132
      // Predicated region
      $region9: #{tpu_custom_call.1} parent=5 // pred_check
        _
      $region10: #{tpu_custom_call.1} parent=5 // pred_check_branch
        %135 = sbr.rel (%p132) target = $region12
      $region11: #{tpu_custom_call.1} parent=5 // pred_region
        %s136 = ssub.s32 %s12, 1
        // Predicated region
        $region13: #{tpu_custom_call.1} parent=11 // pred_check
          %p137 = pneg %p73
        $region14: #{tpu_custom_call.1} parent=11 // pred_check_branch
          %139 = sbr.rel (%p137) target = $region16
        $region15: #{tpu_custom_call.1} parent=11 // pred_region
          _
        $region16: #{tpu_custom_call.1} parent=11 // pred_fallthru
          _
        // Predicated region
        $region17: #{tpu_custom_call.1} parent=11 // pred_check
          %p140 = pneg %p94
        $region18: #{tpu_custom_call.1} parent=11 // pred_check_branch
          %142 = sbr.rel (%p140) target = $region20
        $region19: #{tpu_custom_call.1} parent=11 // pred_region
          _
        $region20: #{tpu_custom_call.1} parent=11 // pred_fallthru
          _
      $region12: #{tpu_custom_call.1} parent=5 // pred_fallthru
        _
      %p143 = scmp.lt.s32.totalorder %s12, 2
      // Predicated region
      $region21: #{tpu_custom_call.1} parent=5 // pred_check
        %p144 = pneg %p143
      $region22: #{tpu_custom_call.1} parent=5 // pred_check_branch
        %146 = sbr.rel (%p144) target = $region24
      $region23: #{tpu_custom_call.1} parent=5 // pred_region
        // Predicated region
        $region25: #{tpu_custom_call.1} parent=23 // pred_check
          %p147 = pneg %p46
        $region26: #{tpu_custom_call.1} parent=23 // pred_check_branch
          %149 = sbr.rel (%p147) target = $region28
        $region27: #{tpu_custom_call.1} parent=23 // pred_region
          %s150 = smul.u32 8, %s20
          %p151 = scmp.lt.s32.totalorder %s19, 1
          %s152 = scalar_select %p151, %s19, 1
          %p153 = scmp.lt.s32.totalorder %s150, 7
          %s154 = scalar_select %p153, %s150, 7
          %s155 = smul.addr %s152, 32
          %s156 = sadd.s32 %s154, %s155
          %s157 = smul.addr %s156, 4
          %s158 = scalar_lea.vmem %s0, %s157
          %s159 = smul.u32 8, %s20
        $region28: #{tpu_custom_call.1} parent=23 // pred_fallthru
          _
      $region24: #{tpu_custom_call.1} parent=5 // pred_fallthru
        _
      %p160 = scmp.le.s32.totalorder 1, %s12
      %p161 = scmp.lt.s32.totalorder %s12, 3
      %p162 = pnand %p160, %p161
      %p163 = pneg %p162
      // Predicated region
      $region29: #{tpu_custom_call.1} parent=5 // pred_check
        _
      $region30: #{tpu_custom_call.1} parent=5 // pred_check_branch
        %165 = sbr.rel (%p162) target = $region32
      $region31: #{tpu_custom_call.1} parent=5 // pred_region
        %s166 = ssub.s32 %s12, 1
        %s167 = smul.u32 8, %s22
        %p168 = scmp.lt.s32.totalorder %s21, 1
        %s169 = scalar_select %p168, %s21, 1
        %p170 = scmp.lt.s32.totalorder %s167, 7
        %s171 = scalar_select %p170, %s167, 7
        %s172 = smul.addr %s169, 32
        %s173 = sadd.s32 %s171, %s172
        %s174 = smul.addr %s173, 4
        %s175 = scalar_lea.vmem %s0, %s174
        %p176 = pneg %p52
        %p177 = pneg %p49
        %p178 = pneg %p73
        %p179 = pneg %p70
        %p180 = pneg %p94
        %p181 = pneg %p91
        %p182 = pneg %p122
        %p183 = pneg %p119
        %s184 = sand.u32 %s109, 1
        %s185 = scalar_lea.sflag [#allocation3], %s184
        %s186 = sand.u32 %s109, 1
        %s187 = smul.addr %s186, 32
        %s188 = scalar_lea.vmem [#allocation2], %s187
        %s189 = smul.u32 8, %s22
        %p190 = scmp.lt.s32.totalorder %s21, 1
        %s191 = scalar_select %p190, %s21, 1
        %p192 = scmp.lt.s32.totalorder %s189, 7
        %s193 = scalar_select %p192, %s189, 7
        %s194 = smul.addr %s191, 32
        %s195 = sadd.s32 %s193, %s194
        %s196 = smul.addr %s195, 4
        %s197 = scalar_lea.vmem %s0, %s196
        %s198 = smul.u32 8, %s22
        %s199 = smul.u32 8, %s22
        %v201 = vld [vmem:[%s197] sm:$0xf]
        %v202 = vld [vmem:[%s197 + $0x4] sm:$0xf]
        %v203 = vld [vmem:[%s197 + $0x8] sm:$0xf]
        %v204 = vld [vmem:[%s197 + $0xc] sm:$0xf]
        %v205 = vld [vmem:[%s197 + $0x10] sm:$0xf]
        %v206 = vld [vmem:[%s197 + $0x14] sm:$0xf]
        %v207 = vld [vmem:[%s197 + $0x18] sm:$0xf]
        %v208 = vld [vmem:[%s197 + $0x1c] sm:$0xf]
        %v209 = vld [vmem:[%s197 + $0x20] sm:$0xf]
        %v210 = vld [vmem:[%s197 + $0x24] sm:$0xf]
        %v211 = vld [vmem:[%s197 + $0x28] sm:$0xf]
        %v212 = vld [vmem:[%s197 + $0x2c] sm:$0xf]
        %v213 = vld [vmem:[%s197 + $0x30] sm:$0xf]
        %v214 = vld [vmem:[%s197 + $0x34] sm:$0xf]
        %v215 = vld [vmem:[%s197 + $0x38] sm:$0xf]
        %v216 = vld [vmem:[%s197 + $0x3c] sm:$0xf]
        %v217 = vld [vmem:[%s197 + $0x40] sm:$0xf]
        %v218 = vld [vmem:[%s197 + $0x44] sm:$0xf]
        %v219 = vld [vmem:[%s197 + $0x48] sm:$0xf]
        %v220 = vld [vmem:[%s197 + $0x4c] sm:$0xf]
        %v221 = vld [vmem:[%s197 + $0x50] sm:$0xf]
        %v222 = vld [vmem:[%s197 + $0x54] sm:$0xf]
        %v223 = vld [vmem:[%s197 + $0x58] sm:$0xf]
        %v224 = vld [vmem:[%s197 + $0x5c] sm:$0xf]
        %v225 = vld [vmem:[%s197 + $0x60] sm:$0xf]
        %v226 = vld [vmem:[%s197 + $0x64] sm:$0xf]
        %v227 = vld [vmem:[%s197 + $0x68] sm:$0xf]
        %v228 = vld [vmem:[%s197 + $0x6c] sm:$0xf]
        %v229 = vld [vmem:[%s197 + $0x70] sm:$0xf]
        %v230 = vld [vmem:[%s197 + $0x74] sm:$0xf]
        %v231 = vld [vmem:[%s197 + $0x78] sm:$0xf]
        %v232 = vld [vmem:[%s197 + $0x7c] sm:$0xf]
        %v233 = vld [vmem:[%s1] sm:$0xf]
        %v234 = vld [vmem:[%s1 + $0x4] sm:$0xf]
        %v235 = vld [vmem:[%s1 + $0x8] sm:$0xf]
        %v236 = vld [vmem:[%s1 + $0xc] sm:$0x3]
        %v269 = vunpack.c.l.b16 %v201
        %v270 = vunpack.c.l.b16 %v202
        %v271 = vunpack.c.l.b16 %v203
        %v272 = vunpack.c.l.b16 %v204
        %v273 = vunpack.c.l.b16 %v205
        %v274 = vunpack.c.l.b16 %v206
        %v275 = vunpack.c.l.b16 %v207
        %v276 = vunpack.c.l.b16 %v208
        %v277 = vunpack.c.l.b16 %v209
        %v278 = vunpack.c.l.b16 %v210
        %v279 = vunpack.c.l.b16 %v211
        %v280 = vunpack.c.l.b16 %v212
        %v281 = vunpack.c.l.b16 %v213
        %v282 = vunpack.c.l.b16 %v214
        %v283 = vunpack.c.l.b16 %v215
        %v284 = vunpack.c.l.b16 %v216
        %v285 = vunpack.c.l.b16 %v217
        %v286 = vunpack.c.l.b16 %v218
        %v287 = vunpack.c.l.b16 %v219
        %v288 = vunpack.c.l.b16 %v220
        %v289 = vunpack.c.l.b16 %v221
        %v290 = vunpack.c.l.b16 %v222
        %v291 = vunpack.c.l.b16 %v223
        %v292 = vunpack.c.l.b16 %v224
        %v293 = vunpack.c.l.b16 %v225
        %v294 = vunpack.c.l.b16 %v226
        %v295 = vunpack.c.l.b16 %v227
        %v296 = vunpack.c.l.b16 %v228
        %v297 = vunpack.c.l.b16 %v229
        %v298 = vunpack.c.l.b16 %v230
        %v299 = vunpack.c.l.b16 %v231
        %v300 = vunpack.c.l.b16 %v232
        %v301 = vpack.c.b16 %v270, %v269
        %v302 = vpack.c.b16 %v272, %v271
        %v303 = vpack.c.b16 %v274, %v273
        %v304 = vpack.c.b16 %v276, %v275
        %v305 = vpack.c.b16 %v278, %v277
        %v306 = vpack.c.b16 %v280, %v279
        %v307 = vpack.c.b16 %v282, %v281
        %v308 = vpack.c.b16 %v284, %v283
        %v309 = vpack.c.b16 %v286, %v285
        %v310 = vpack.c.b16 %v288, %v287
        %v311 = vpack.c.b16 %v290, %v289
        %v312 = vpack.c.b16 %v292, %v291
        %v313 = vpack.c.b16 %v294, %v293
        %v314 = vpack.c.b16 %v296, %v295
        %v315 = vpack.c.b16 %v298, %v297
        %v316 = vpack.c.b16 %v300, %v299
        %v321 = vunpack.c.l.b16 %v233
        %v322 = vunpack.c.l.b16 %v234
        %v323 = vunpack.c.l.b16 %v235
        %v324 = vunpack.c.l.b16 %v236
        %v325 = vpack.c.b16 %v322, %v321
        %v326 = vpack.c.b16 %v324, %v323
        %vm328 = vcmask 220160
        %v330 = vsel %vm328, %v301, 0
        %v333 = vsel %vm328, %v302, 0
        %v336 = vsel %vm328, %v303, 0
        %v339 = vsel %vm328, %v304, 0
        %v342 = vsel %vm328, %v305, 0
        %v345 = vsel %vm328, %v306, 0
        %v348 = vsel %vm328, %v307, 0
        %v351 = vsel %vm328, %v308, 0
        %v354 = vsel %vm328, %v309, 0
        %v357 = vsel %vm328, %v310, 0
        %v360 = vsel %vm328, %v311, 0
        %v363 = vsel %vm328, %v312, 0
        %v366 = vsel %vm328, %v313, 0
        %v369 = vsel %vm328, %v314, 0
        %v372 = vsel %vm328, %v315, 0
        %v375 = vsel %vm328, %v316, 0
        %vm377 = vcmask 1044480
        %vm378 = vcmask 1045504
        %v379 = vsel %vm377, 4294967295, 65535
        %v380 = vsel %vm378, %v379, 0
        %v382 = vand.u32 %v326, %v380
        %384 = vmatprep.subr.bf16.mxu0 0
        %385 = vmatpush1.bf16.msra.mxu0 %v325
        %386 = vmatprep.subr.bf16.mxu0 0
        %387 = vmatpush1.bf16.msra.mxu0 %v382
        %388 = vmatprep.subr.bf16.mxu0 0
        %389 = vmatpush1.bf16.msra.mxu0 0
        %390 = vmatprep.subr.bf16.mxu0 0
        %391 = vmatpush1.bf16.msra.mxu0 0
        %392 = vmatprep.subr.bf16.mxu0 0
        %393 = vmatpush1.bf16.msra.mxu0 0
        %394 = vmatprep.subr.bf16.mxu0 0
        %395 = vmatpush1.bf16.msra.mxu0 0
        %396 = vmatprep.subr.bf16.mxu0 0
        %397 = vmatpush1.bf16.msra.mxu0 0
        %398 = vmatprep.subr.bf16.mxu0 0
        %399 = vmatpush1.bf16.msra.mxu0 0
        %400 = vmatprep.subr.bf16.mxu0 0
        %401 = vmatpush1.bf16.msra.mxu0 0
        %402 = vmatprep.subr.bf16.mxu0 0
        %403 = vmatpush1.bf16.msra.mxu0 0
        %404 = vmatprep.subr.bf16.mxu0 0
        %405 = vmatpush1.bf16.msra.mxu0 0
        %406 = vmatprep.subr.bf16.mxu0 0
        %407 = vmatpush1.bf16.msra.mxu0 0
        %408 = vmatprep.subr.bf16.mxu0 0
        %409 = vmatpush1.bf16.msra.mxu0 0
        %410 = vmatprep.subr.bf16.mxu0 0
        %411 = vmatpush1.bf16.msra.mxu0 0
        %412 = vmatprep.subr.bf16.mxu0 0
        %413 = vmatpush1.bf16.msra.mxu0 0
        %414 = vmatprep.subr.bf16.mxu0 0
        %415 = vmatpush1.bf16.msra.mxu0 0
        %416 = vmatprep.mubr.bf16.mxu0 0
        %417 = vmatmul.mubr.bf16.gmra.mrb[0].mxu0 %v330
        %v418 = vpop.f32.mrb[0].mxu0
        %v419 = vadd.f32 0.0, %v418
        %v420 = vpop.f32.mrb[0].mxu0
        %v421 = vpop.f32.mrb[0].mxu0
        %v422 = vadd.f32 0.0, %v421
        %v423 = vpop.f32.mrb[0].mxu0
        %424 = vmatprep.mubr.bf16.mxu0 0
        %425 = vmatmul.mubr.bf16.gmra.mrb[0].mxu0 %v333
        %v426 = vpop.f32.mrb[0].mxu0
        %v427 = vadd.f32 0.0, %v426
        %v428 = vpop.f32.mrb[0].mxu0
        %v429 = vpop.f32.mrb[0].mxu0
        %v430 = vadd.f32 0.0, %v429
        %v431 = vpop.f32.mrb[0].mxu0
        %432 = vmatprep.mubr.bf16.mxu0 0
        %433 = vmatmul.mubr.bf16.gmra.mrb[0].mxu0 %v336
        %v434 = vpop.f32.mrb[0].mxu0
        %v435 = vadd.f32 0.0, %v434
        %v436 = vpop.f32.mrb[0].mxu0
        %v437 = vpop.f32.mrb[0].mxu0
        %v438 = vadd.f32 0.0, %v437
        %v439 = vpop.f32.mrb[0].mxu0
        %440 = vmatprep.mubr.bf16.mxu0 0
        %441 = vmatmul.mubr.bf16.gmra.mrb[0].mxu0 %v339
        %v442 = vpop.f32.mrb[0].mxu0
        %v443 = vadd.f32 0.0, %v442
        %v444 = vpop.f32.mrb[0].mxu0
        %v445 = vpop.f32.mrb[0].mxu0
        %v446 = vadd.f32 0.0, %v445
        %v447 = vpop.f32.mrb[0].mxu0
        %448 = vmatprep.mubr.bf16.mxu0 0
        %449 = vmatmul.mubr.bf16.gmra.mrb[0].mxu0 %v342
        %v450 = vpop.f32.mrb[0].mxu0
        %v451 = vadd.f32 0.0, %v450
        %v452 = vpop.f32.mrb[0].mxu0
        %v453 = vpop.f32.mrb[0].mxu0
        %v454 = vadd.f32 0.0, %v453
        %v455 = vpop.f32.mrb[0].mxu0
        %456 = vmatprep.mubr.bf16.mxu0 0
        %457 = vmatmul.mubr.bf16.gmra.mrb[0].mxu0 %v345
        %v458 = vpop.f32.mrb[0].mxu0
        %v459 = vadd.f32 0.0, %v458
        %v460 = vpop.f32.mrb[0].mxu0
        %v461 = vpop.f32.mrb[0].mxu0
        %v462 = vadd.f32 0.0, %v461
        %v463 = vpop.f32.mrb[0].mxu0
        %464 = vmatprep.mubr.bf16.mxu0 0
        %465 = vmatmul.mubr.bf16.gmra.mrb[0].mxu0 %v348
        %v466 = vpop.f32.mrb[0].mxu0
        %v467 = vadd.f32 0.0, %v466
        %v468 = vpop.f32.mrb[0].mxu0
        %v469 = vpop.f32.mrb[0].mxu0
        %v470 = vadd.f32 0.0, %v469
        %v471 = vpop.f32.mrb[0].mxu0
        %472 = vmatprep.mubr.bf16.mxu0 0
        %473 = vmatmul.mubr.bf16.gmra.mrb[0].mxu0 %v351
        %v474 = vpop.f32.mrb[0].mxu0
        %v475 = vadd.f32 0.0, %v474
        %v476 = vpop.f32.mrb[0].mxu0
        %v477 = vpop.f32.mrb[0].mxu0
        %v478 = vadd.f32 0.0, %v477
        %v479 = vpop.f32.mrb[0].mxu0
        %480 = vmatprep.mubr.bf16.mxu0 0
        %481 = vmatmul.mubr.bf16.gmra.mrb[0].mxu0 %v354
        %v482 = vpop.f32.mrb[0].mxu0
        %v483 = vadd.f32 0.0, %v482
        %v484 = vpop.f32.mrb[0].mxu0
        %v485 = vpop.f32.mrb[0].mxu0
        %v486 = vadd.f32 0.0, %v485
        %v487 = vpop.f32.mrb[0].mxu0
        %488 = vmatprep.mubr.bf16.mxu0 0
        %489 = vmatmul.mubr.bf16.gmra.mrb[0].mxu0 %v357
        %v490 = vpop.f32.mrb[0].mxu0
        %v491 = vadd.f32 0.0, %v490
        %v492 = vpop.f32.mrb[0].mxu0
        %v493 = vpop.f32.mrb[0].mxu0
        %v494 = vadd.f32 0.0, %v493
        %v495 = vpop.f32.mrb[0].mxu0
        %496 = vmatprep.mubr.bf16.mxu0 0
        %497 = vmatmul.mubr.bf16.gmra.mrb[0].mxu0 %v360
        %v498 = vpop.f32.mrb[0].mxu0
        %v499 = vadd.f32 0.0, %v498
        %v500 = vpop.f32.mrb[0].mxu0
        %v501 = vpop.f32.mrb[0].mxu0
        %v502 = vadd.f32 0.0, %v501
        %v503 = vpop.f32.mrb[0].mxu0
        %504 = vmatprep.mubr.bf16.mxu0 0
        %505 = vmatmul.mubr.bf16.gmra.mrb[0].mxu0 %v363
        %v506 = vpop.f32.mrb[0].mxu0
        %v507 = vadd.f32 0.0, %v506
        %v508 = vpop.f32.mrb[0].mxu0
        %v509 = vpop.f32.mrb[0].mxu0
        %v510 = vadd.f32 0.0, %v509
        %v511 = vpop.f32.mrb[0].mxu0
        %512 = vmatprep.mubr.bf16.mxu0 0
        %513 = vmatmul.mubr.bf16.gmra.mrb[0].mxu0 %v366
        %v514 = vpop.f32.mrb[0].mxu0
        %v515 = vadd.f32 0.0, %v514
        %v516 = vpop.f32.mrb[0].mxu0
        %v517 = vpop.f32.mrb[0].mxu0
        %v518 = vadd.f32 0.0, %v517
        %v519 = vpop.f32.mrb[0].mxu0
        %520 = vmatprep.mubr.bf16.mxu0 0
        %521 = vmatmul.mubr.bf16.gmra.mrb[0].mxu0 %v369
        %v522 = vpop.f32.mrb[0].mxu0
        %v523 = vadd.f32 0.0, %v522
        %v524 = vpop.f32.mrb[0].mxu0
        %v525 = vpop.f32.mrb[0].mxu0
        %v526 = vadd.f32 0.0, %v525
        %v527 = vpop.f32.mrb[0].mxu0
        %528 = vmatprep.mubr.bf16.mxu0 0
        %529 = vmatmul.mubr.bf16.gmra.mrb[0].mxu0 %v372
        %v530 = vpop.f32.mrb[0].mxu0
        %v531 = vadd.f32 0.0, %v530
        %v532 = vpop.f32.mrb[0].mxu0
        %v533 = vpop.f32.mrb[0].mxu0
        %v534 = vadd.f32 0.0, %v533
        %v535 = vpop.f32.mrb[0].mxu0
        %536 = vmatprep.mubr.bf16.mxu0 0
        %537 = vmatmul.mubr.bf16.gmra.mrb[0].mxu0 %v375
        %v538 = vpop.f32.mrb[0].mxu0
        %v539 = vadd.f32 0.0, %v538
        %v540 = vpop.f32.mrb[0].mxu0
        %v541 = vpop.f32.mrb[0].mxu0
        %v542 = vadd.f32 0.0, %v541
        %v543 = vpop.f32.mrb[0].mxu0
        %544 = vdwg.mxu0
        %v545 = vmax.f32 %v419, %v451
        %v546 = vmax.f32 %v422, %v454
        %v547 = vmax.f32 %v427, %v459
        %v548 = vmax.f32 %v430, %v462
        %v549 = vmax.f32 %v435, %v467
        %v550 = vmax.f32 %v438, %v470
        %v551 = vmax.f32 %v443, %v475
        %v552 = vmax.f32 %v446, %v478
        %v553 = vmax.f32 %v483, %v515
        %v554 = vmax.f32 %v486, %v518
        %v555 = vmax.f32 %v491, %v523
        %v556 = vmax.f32 %v494, %v526
        %v557 = vmax.f32 %v499, %v531
        %v558 = vmax.f32 %v502, %v534
        %v559 = vmax.f32 %v507, %v539
        %v560 = vmax.f32 %v510, %v542
        %v561 = vmax.f32 %v545, %v553
        %v562 = vmax.f32 %v546, %v554
        %v563 = vmax.f32 %v547, %v555
        %v564 = vmax.f32 %v548, %v556
        %v565 = vmax.f32 %v549, %v557
        %v566 = vmax.f32 %v550, %v558
        %v567 = vmax.f32 %v551, %v559
        %v568 = vmax.f32 %v552, %v560
        %v569 = vld [vmem:[%s2] sm:$0x1]
        %v571 = vlaneseq
        %v572 = vshrl.u32 %v571, 7
        %v573 = vsub.s32 0, %v572
        %v574 = vrot.slane %v569, %v573
        %v576 = vadd.f32 %v561, %v574
        %v577 = vadd.f32 %v562, %v574
        %v578 = vadd.f32 %v563, %v574
        %v579 = vadd.f32 %v564, %v574
        %v580 = vadd.f32 %v565, %v574
        %v581 = vadd.f32 %v566, %v574
        %v582 = vadd.f32 %v567, %v574
        %v583 = vadd.f32 %v568, %v574
        %v584 = vmax.f32 %v576, 0.0
        %v585 = vmax.f32 %v577, 0.0
        %v586 = vmax.f32 %v578, 0.0
        %v587 = vmax.f32 %v579, 0.0
        %v588 = vmax.f32 %v580, 0.0
        %v589 = vmax.f32 %v581, 0.0
        %v590 = vmax.f32 %v582, 0.0
        %v591 = vmax.f32 %v583, 0.0
        %v592 = vpack.c.bf16 %v585, %v584
        %v593 = vpack.c.bf16 %v587, %v586
        %v594 = vpack.c.bf16 %v589, %v588
        %v595 = vpack.c.bf16 %v591, %v590
        %v600 = vunpack.c.l.b16 %v592
        %v601 = vunpack.c.h.b16 %v592
        %v602 = vunpack.c.l.b16 %v593
        %v603 = vunpack.c.h.b16 %v593
        %v604 = vunpack.c.l.b16 %v594
        %v605 = vunpack.c.h.b16 %v594
        %v606 = vunpack.c.l.b16 %v595
        %v607 = vunpack.c.h.b16 %v595
        %v608 = vpack.c.b16 %v600, %v600
        %v609 = vpack.c.b16 %v601, %v601
        %v610 = vpack.c.b16 %v602, %v602
        %v611 = vpack.c.b16 %v603, %v603
        %v612 = vpack.c.b16 %v604, %v604
        %v613 = vpack.c.b16 %v605, %v605
        %v614 = vpack.c.b16 %v606, %v606
        %v615 = vpack.c.b16 %v607, %v607
        %vm624 = vcmask 519168
        %625 = vst.msk [vmem:[%s188] sm:$0xf] %vm624, %v608
        %626 = vst.msk [vmem:[%s188 + $0x4] sm:$0xf] %vm624, %v609
        %627 = vst.msk [vmem:[%s188 + $0x8] sm:$0xf] %vm624, %v610
        %628 = vst.msk [vmem:[%s188 + $0xc] sm:$0xf] %vm624, %v611
        %629 = vst.msk [vmem:[%s188 + $0x10] sm:$0xf] %vm624, %v612
        %630 = vst.msk [vmem:[%s188 + $0x14] sm:$0xf] %vm624, %v613
        %631 = vst.msk [vmem:[%s188 + $0x18] sm:$0xf] %vm624, %v614
        %632 = vst.msk [vmem:[%s188 + $0x1c] sm:$0xf] %vm624, %v615
        %s633 = sand.u32 %s109, 1
        %s634 = scalar_lea.sflag [#allocation3], %s633
        %s635 = sand.u32 %s109, 1
        %s636 = smul.addr %s635, 32
        %s637 = scalar_lea.vmem [#allocation2], %s636
        // Predicated region
        $region33: #{tpu_custom_call.1} parent=31 // pred_check
          %p638 = pneg %p119
        $region34: #{tpu_custom_call.1} parent=31 // pred_check_branch
          %640 = sbr.rel (%p638) target = $region36
        $region35: #{tpu_custom_call.1} parent=31 // pred_region
          %s641 = smul.u32 8, %s22
          %s643 = ssub.s32 512, 512
          %644 = vsyncadd %s634, %s643
          %s645 = smul.addr %s21, 8
          %s646 = sadd.s32 %s641, %s645
          %s647 = smul.addr %s646, 64
          %s648 = scalar_lea.hbm %s3, %s647
          %s649 = sshll.u32 %s637, 4
          %s650 = int_to_ptr.vmem [resolvable:$true] %s649
          %655 = dma.vmem_to_hbm [thread:$0]  %s650, 512, %s648, %s634, 64, 64, 4
        $region36: #{tpu_custom_call.1} parent=31 // pred_fallthru
          _
      $region32: #{tpu_custom_call.1} parent=5 // pred_fallthru
        _
      %p656 = scmp.le.s32.totalorder 2, %s12
      // Predicated region
      $region37: #{tpu_custom_call.1} parent=5 // pred_check
        %p657 = pneg %p656
      $region38: #{tpu_custom_call.1} parent=5 // pred_check_branch
        %659 = sbr.rel (%p657) target = $region40
      $region39: #{tpu_custom_call.1} parent=5 // pred_region
        %s660 = ssub.s32 %s12, 2
        // Predicated region
        $region41: #{tpu_custom_call.1} parent=39 // pred_check
          %p661 = pneg %p125
        $region42: #{tpu_custom_call.1} parent=39 // pred_check_branch
          %663 = sbr.rel (%p661) target = $region44
        $region43: #{tpu_custom_call.1} parent=39 // pred_region
          %s664 = sand.u32 %s110, 1
          %s665 = scalar_lea.sflag [#allocation3], %s664
          %s666 = sand.u32 %s110, 1
          %s667 = smul.addr %s666, 32
          %s668 = scalar_lea.vmem [#allocation2], %s667
          %669 = dma.done %s665, 512
        $region44: #{tpu_custom_call.1} parent=39 // pred_fallthru
          _
      $region40: #{tpu_custom_call.1} parent=5 // pred_fallthru
        _
    $region6: #{tpu_custom_call.1} parent=1 // loop_footer
      %s16 = sadd.s32 1, %s12
    $region7: #{tpu_custom_call.1} parent=1 // loop_footer_branch
      %11 = sbr.rel target = $region3
    $region8: #{tpu_custom_call.1} parent=1 // loop_exit
      _
    %670 = vsyncpa [#allocation3], 1
    %s671 = scalar_lea.sflag [#allocation3], 1
    %672 = vsyncpa %s671, 1

</llo_original>
